<compile_context>
chip_gen: v7x
topology: tpu7x:2x2x1
jax: 0.10.0
libtpu: 0.0.40
codegen_flags: <defaults>
</compile_context>

<pallas_src>
import jax
import jax.numpy as jnp
from jax.experimental import pallas as pl
from jax.experimental.pallas import tpu as pltpu


def _attn_agg_kernel(x_ref, w1_ref, b1_ref, w2_ref, b2_ref, o_ref):
    # x_ref block: (Bt, S, E); w1: (E, A); b1: (1, A); w2 (row): (1, A); b2: (1, 1) in SMEM.
    Bt, S, E = x_ref.shape
    x3 = x_ref[...]                                            # (Bt, S, E)
    x2 = x3.reshape(Bt * S, E)                                 # free merge of leading dims

    # query MLP: Linear(E->A) -> ReLU, single MXU matmul with M = Bt*S rows.
    h = jnp.dot(x2, w1_ref[...], preferred_element_type=jnp.float32) + b1_ref[...]
    h = jnp.maximum(h, 0.0)                                    # (Bt*S, A)

    # Linear(A->1) as VPU multiply + lane (XLU) reduce instead of an N=1 MXU matmul.
    score = jnp.sum(h * w2_ref[...], axis=-1, keepdims=True) + b2_ref[0, 0]   # (Bt*S, 1)
    score = score.reshape(Bt, S, 1)                            # split leading dims back

    # softmax over the sequence axis (dim=-2 in the PyTorch module), per batch row.
    m = jnp.max(score, axis=1, keepdims=True)                  # (Bt, 1, 1)
    e = jnp.exp(score - m)                                     # (Bt, S, 1)
    denom = jnp.sum(e, axis=1, keepdims=True)                  # (Bt, 1, 1)
    attn = e * pl.reciprocal(denom, approx=True)               # (Bt, S, 1)

    # weighted sum over S -> dense (Bt, E) output slab.
    o_ref[...] = jnp.sum(attn * x3, axis=1).astype(o_ref.dtype)


def attention_aggregator(x, w1, b1, w2, b2, *, block_b=None,
                         vmem_limit_bytes=48 * 1024 * 1024):
    """x: (B, S, E) float32; w1: (E, A); b1: (A,); w2: (A, 1); b2: (1,). Returns (B, E)."""
    B, S, E = x.shape
    A = w1.shape[1]

    # Reshape small params once on the host side.
    b1_row = b1.reshape(1, A)
    w2_row = w2.reshape(1, A)     # (A, 1) -> (1, A): used as a broadcast row inside the kernel
    b2_s = b2.reshape(1, 1)       # scalar, passed via SMEM

    # Pick a batch tile: as many rows as fit an ~8 MiB x block (Pallas double-buffers it),
    # rounded to a multiple of 8 for a sublane-dense output block when tiling is needed.
    if block_b is None:
        row_bytes = S * E * x.dtype.itemsize
        budget = 8 * 1024 * 1024
        rows = max(1, budget // row_bytes)
        if rows >= B or B <= 8:
            block_b = B
        else:
            block_b = max(8, (min(rows, B) // 8) * 8)
    Bt = min(block_b, B)
    grid = (pl.cdiv(B, Bt),)

    return pl.pallas_call(
        _attn_agg_kernel,
        out_shape=jax.ShapeDtypeStruct((B, E), x.dtype),
        grid_spec=pltpu.PrefetchScalarGridSpec(
            num_scalar_prefetch=0,
            grid=grid,
            in_specs=[
                pl.BlockSpec((Bt, S, E), lambda b: (b, 0, 0)),   # x: one batch tile per step
                pl.BlockSpec((E, A), lambda b: (0, 0)),          # W1 (resident across steps)
                pl.BlockSpec((1, A), lambda b: (0, 0)),          # b1
                pl.BlockSpec((1, A), lambda b: (0, 0)),          # W2 as a row
                pl.BlockSpec(memory_space=pltpu.MemorySpace.SMEM),  # b2 scalar in SMEM
            ],
            out_specs=pl.BlockSpec((Bt, E), lambda b: (b, 0)),   # lane/sublane-dense output slab
        ),
        compiler_params=pltpu.CompilerParams(
            dimension_semantics=("parallel",),
            vmem_limit_bytes=vmem_limit_bytes,
        ),
    )(x, w1, b1_row, w2_row, b2_s)


def reference(x, w1, b1, w2, b2):
    h = jnp.maximum(x @ w1 + b1, 0.0)            # (B, S, A)
    score = h @ w2 + b2                          # (B, S, 1)
    attn = jax.nn.softmax(score, axis=-2)        # softmax over S
    return jnp.sum(attn * x, axis=-2)            # (B, E)


if __name__ == "__main__":
    # Small shapes consistent with the module: embedding_dim=32, agg_dim=16, batch=2, seq=8
    B, S, E, A = 2, 8, 32, 16
    key = jax.random.PRNGKey(0)
    kx, kw1, kb1, kw2, kb2 = jax.random.split(key, 5)

    x = jax.random.normal(kx, (B, S, E), dtype=jnp.float32)
    # Deterministic parameter init (PyTorch-Linear-style uniform bounds).
    bound1 = 1.0 / (E ** 0.5)
    w1 = jax.random.uniform(kw1, (E, A), minval=-bound1, maxval=bound1, dtype=jnp.float32)
    b1 = jax.random.uniform(kb1, (A,), minval=-bound1, maxval=bound1, dtype=jnp.float32)
    bound2 = 1.0 / (A ** 0.5)
    w2 = jax.random.uniform(kw2, (A, 1), minval=-bound2, maxval=bound2, dtype=jnp.float32)
    b2 = jax.random.uniform(kb2, (1,), minval=-bound2, maxval=bound2, dtype=jnp.float32)

    out = attention_aggregator(x, w1, b1, w2, b2)
    out = jax.block_until_ready(out)

    ref = reference(x, w1, b1, w2, b2)
    assert out.shape == (B, E)
    # approx reciprocal in the softmax denominator loosens tolerance slightly vs pure f32.
    assert jnp.allclose(out, ref, atol=1e-3, rtol=1e-3), "mismatch vs reference"

    print("KERNEL_OK")
</pallas_src>

<mosaic_0001>
module attributes {stable_mosaic.version = 11 : i64} {
  func.func @_attn_agg_kernel(%arg0: i32, %arg1: memref<2x8x32xf32, #tpu.memory_space<vmem>>, %arg2: memref<32x16xf32, #tpu.memory_space<vmem>>, %arg3: memref<1x16xf32, #tpu.memory_space<vmem>>, %arg4: memref<1x16xf32, #tpu.memory_space<vmem>>, %arg5: memref<1x1xf32, #tpu.memory_space<smem>>, %arg6: memref<2x32xf32, #tpu.memory_space<vmem>>) attributes {dimension_semantics = [#tpu.dimension_semantics<parallel>], iteration_bounds = array<i64: 1>, scalar_prefetch = 0 : i64, scratch_operands = 0 : i64, tpu.core_type = #tpu.core_type<tc>, window_params = [{transform_indices = @transform_0, window_bounds = array<i64: 2, 8, 32>}, {pipeline_mode = #tpu.pipeline_mode<synchronous>, transform_indices = @transform_1, window_bounds = array<i64: 32, 16>}, {pipeline_mode = #tpu.pipeline_mode<synchronous>, transform_indices = @transform_2, window_bounds = array<i64: 1, 16>}, {pipeline_mode = #tpu.pipeline_mode<synchronous>, transform_indices = @transform_3, window_bounds = array<i64: 1, 16>}, {transform_indices = @transform_4, window_bounds = array<i64: 1, 1>}, {transform_indices = @transform_5, window_bounds = array<i64: 2, 32>}]} {
    %c0 = arith.constant 0 : index
    %c0_0 = arith.constant 0 : index
    %c0_1 = arith.constant 0 : index
    %0 = vector.load %arg1[%c0, %c0_0, %c0_1] : memref<2x8x32xf32, #tpu.memory_space<vmem>>, vector<2x8x32xf32>
    %1 = vector.shape_cast %0 : vector<2x8x32xf32> to vector<16x32xf32>
    %c0_2 = arith.constant 0 : index
    %c0_3 = arith.constant 0 : index
    %2 = vector.load %arg2[%c0_2, %c0_3] : memref<32x16xf32, #tpu.memory_space<vmem>>, vector<32x16xf32>
    %cst = arith.constant dense<0.000000e+00> : vector<16x16xf32>
    %3 = tpu.matmul %1, %2, %cst {dimension_numbers = #tpu.dot_dimension_numbers<[1], [0], [0], [1], [0, 0, 1, 1], [], []>} : vector<16x32xf32>, vector<32x16xf32>, vector<16x16xf32> -> vector<16x16xf32>
    %c0_4 = arith.constant 0 : index
    %c0_5 = arith.constant 0 : index
    %4 = vector.load %arg3[%c0_4, %c0_5] : memref<1x16xf32, #tpu.memory_space<vmem>>, vector<1x16xf32>
    %5 = vector.broadcast %4 : vector<1x16xf32> to vector<16x16xf32>
    %6 = arith.addf %3, %5 : vector<16x16xf32>
    %cst_6 = arith.constant 0.000000e+00 : f32
    %7 = vector.broadcast %cst_6 : f32 to vector<16x16xf32>
    %8 = arith.maximumf %6, %7 : vector<16x16xf32>
    %c0_7 = arith.constant 0 : index
    %c0_8 = arith.constant 0 : index
    %9 = vector.load %arg4[%c0_7, %c0_8] : memref<1x16xf32, #tpu.memory_space<vmem>>, vector<1x16xf32>
    %10 = vector.broadcast %9 : vector<1x16xf32> to vector<16x16xf32>
    %11 = arith.mulf %8, %10 : vector<16x16xf32>
    %cst_9 = arith.constant dense<0.000000e+00> : vector<16xf32>
    %12 = vector.multi_reduction <add>, %11, %cst_9 [1] : vector<16x16xf32> to vector<16xf32>
    %13 = vector.shape_cast %12 : vector<16xf32> to vector<16x1xf32>
    %c0_10 = arith.constant 0 : index
    %c0_11 = arith.constant 0 : index
    %14 = memref.load %arg5[%c0_10, %c0_11] : memref<1x1xf32, #tpu.memory_space<smem>>
    %15 = vector.broadcast %14 : f32 to vector<16x1xf32>
    %16 = arith.addf %13, %15 : vector<16x1xf32>
    %17 = vector.shape_cast %16 : vector<16x1xf32> to vector<2x8x1xf32>
    %cst_12 = arith.constant dense<0xFF800000> : vector<2x1xf32>
    %18 = vector.multi_reduction <maximumf>, %17, %cst_12 [1] : vector<2x8x1xf32> to vector<2x1xf32>
    %19 = vector.shape_cast %18 : vector<2x1xf32> to vector<2x1x1xf32>
    %20 = vector.broadcast %19 : vector<2x1x1xf32> to vector<2x8x1xf32>
    %21 = arith.subf %17, %20 : vector<2x8x1xf32>
    %22 = math.exp %21 : vector<2x8x1xf32>
    %cst_13 = arith.constant dense<0.000000e+00> : vector<2x1xf32>
    %23 = vector.multi_reduction <add>, %22, %cst_13 [1] : vector<2x8x1xf32> to vector<2x1xf32>
    %24 = vector.shape_cast %23 : vector<2x1xf32> to vector<2x1x1xf32>
    %25 = tpu.reciprocal %24 {approx = true} : vector<2x1x1xf32> -> vector<2x1x1xf32>
    %26 = vector.broadcast %25 : vector<2x1x1xf32> to vector<2x8x1xf32>
    %27 = arith.mulf %22, %26 : vector<2x8x1xf32>
    %28 = vector.broadcast %27 : vector<2x8x1xf32> to vector<2x8x32xf32>
    %29 = arith.mulf %28, %0 : vector<2x8x32xf32>
    %cst_14 = arith.constant dense<0.000000e+00> : vector<2x32xf32>
    %30 = vector.multi_reduction <add>, %29, %cst_14 [1] : vector<2x8x32xf32> to vector<2x32xf32>
    %c0_15 = arith.constant 0 : index
    %c0_16 = arith.constant 0 : index
    %31 = vector.load %arg6[%c0_15, %c0_16] : memref<2x32xf32, #tpu.memory_space<vmem>>, vector<2x32xf32>
    tpu.vector_store %arg6[%c0_15, %c0_16], %30 {strides = array<i32>} : memref<2x32xf32, #tpu.memory_space<vmem>>, vector<2x32xf32>,
    return
  }
  func.func @transform_0(%arg0: i32) -> (i32, i32, i32) {
    %c0_i32 = arith.constant 0 : i32
    %c0_i32_0 = arith.constant 0 : i32
    %c0_i32_1 = arith.constant 0 : i32
    return %arg0, %c0_i32, %c0_i32_0 : i32, i32, i32
  }
  func.func @transform_1(%arg0: i32) -> (i32, i32) {
    %c0_i32 = arith.constant 0 : i32
    %c0_i32_0 = arith.constant 0 : i32
    %c0_i32_1 = arith.constant 0 : i32
    return %c0_i32, %c0_i32_0 : i32, i32
  }
  func.func @transform_2(%arg0: i32) -> (i32, i32) {
    %c0_i32 = arith.constant 0 : i32
    %c0_i32_0 = arith.constant 0 : i32
    %c0_i32_1 = arith.constant 0 : i32
    return %c0_i32, %c0_i32_0 : i32, i32
  }
  func.func @transform_3(%arg0: i32) -> (i32, i32) {
    %c0_i32 = arith.constant 0 : i32
    %c0_i32_0 = arith.constant 0 : i32
    %c0_i32_1 = arith.constant 0 : i32
    return %c0_i32, %c0_i32_0 : i32, i32
  }
  func.func @transform_4(%arg0: i32) -> (i32, i32) {
    %c0_i32 = arith.constant 0 : i32
    %c0_i32_0 = arith.constant 0 : i32
    %c0_i32_1 = arith.constant 0 : i32
    return %c0_i32, %c0_i32_0 : i32, i32
  }
  func.func @transform_5(%arg0: i32) -> (i32, i32) {
    %c0_i32 = arith.constant 0 : i32
    %c0_i32_0 = arith.constant 0 : i32
    return %arg0, %c0_i32 : i32, i32
  }
}

</mosaic_0001>

<llo_original>
// kernel: tpu_custom_call.1
$region0: #{tpu_custom_call.1}
  #allocation0 [shape = 'u32[]', space=smem, size = 0x4, offset = 0x4, fixed_abs, tag = 'smem constant byte address 0x4 - core index']
  #allocation1 [shape = 'u32[144,128]{1,0:T(1,128)}', space=vmem, size = 0x12000, scoped, tag = 'internal scratch']
  #allocation2 [shape = 'f32[1,1]{1,0:T(1,128)S(6)}', space=smem, size = 0x200, scoped, tag = 'scoped memory for tpu_custom_call.1']
  %s0 = inlined_call_operand.vmem [shape: f32[2,8,32], index: 0, kind: input, shape index: {}]
  %s1 = inlined_call_operand.vmem [shape: f32[32,16], index: 1, kind: input, shape index: {}]
  %s2 = inlined_call_operand.vmem [shape: f32[1,16], index: 2, kind: input, shape index: {}]
  %s3 = inlined_call_operand.vmem [shape: f32[1,16], index: 3, kind: input, shape index: {}]
  %s4 = inlined_call_operand.<no memory space> [shape: f32[1,1], index: 4, kind: input, shape index: {}]
  %s5 = inlined_call_operand.hbm [shape: f32[2,32], index: 5, kind: output, shape index: {}]
  %s6 = sld [smem:[#allocation0]]
  $region30: #{tpu_custom_call.1} parent=0
    _
  %s8 = ssub.s32 1, %s6
  %s9 = scalar_select 0, %s8, %s6
  %10 = sst [smem:[#allocation2]] %s4
  $region1: #{tpu_custom_call.1} parent=0
    #allocation3 [shape = 'u8[1024]{0}', space=vmem, size = 0x400, scoped, tag = 'output window, operand 0, single buffered']
    #allocation4 [shape = 's32[1]{0}', space=sflag, size = 0x4, scoped, tag = 'scoped memory for tpu_custom_call.1']
    %11 = vsyncpa [#allocation4], 0
    // Predicated region
    $region2: #{tpu_custom_call.1} parent=1 // pred_check
      _
    $region3: #{tpu_custom_call.1} parent=1 // pred_check_branch
      %13 = sbr.rel (0) target = $region5
    $region4: #{tpu_custom_call.1} parent=1 // pred_region
      _
    $region5: #{tpu_custom_call.1} parent=1 // pred_fallthru
      _
    // Predicated region
    $region6: #{tpu_custom_call.1} parent=1 // pred_check
      _
    $region7: #{tpu_custom_call.1} parent=1 // pred_check_branch
      %15 = sbr.rel (0) target = $region9
    $region8: #{tpu_custom_call.1} parent=1 // pred_region
      _
    $region9: #{tpu_custom_call.1} parent=1 // pred_fallthru
      _
    // Predicated region
    $region10: #{tpu_custom_call.1} parent=1 // pred_check
      _
    $region11: #{tpu_custom_call.1} parent=1 // pred_check_branch
      %17 = sbr.rel (0) target = $region13
    $region12: #{tpu_custom_call.1} parent=1 // pred_region
      _
    $region13: #{tpu_custom_call.1} parent=1 // pred_fallthru
      _
    // Predicated region
    $region14: #{tpu_custom_call.1} parent=1 // pred_check
      _
    $region15: #{tpu_custom_call.1} parent=1 // pred_check_branch
      %19 = sbr.rel (0) target = $region17
    $region16: #{tpu_custom_call.1} parent=1 // pred_region
      _
    $region17: #{tpu_custom_call.1} parent=1 // pred_fallthru
      _
    // Predicated region
    $region18: #{tpu_custom_call.1} parent=1 // pred_check
      _
    $region19: #{tpu_custom_call.1} parent=1 // pred_check_branch
      %21 = sbr.rel (0) target = $region21
    $region20: #{tpu_custom_call.1} parent=1 // pred_region
      _
    $region21: #{tpu_custom_call.1} parent=1 // pred_fallthru
      _
    %v22 = vld [vmem:[%s0] sm:$0xff]
    %v23 = vld [vmem:[%s0 + $0x8] sm:$0xff]
    %v24 = vld [vmem:[%s1] sm:$0xff]
    %v25 = vld [vmem:[%s1 + $0x8] sm:$0xff]
    %v26 = vld [vmem:[%s1 + $0x10] sm:$0xff]
    %v27 = vld [vmem:[%s1 + $0x18] sm:$0xff]
    %v28 = vld [vmem:[%s2] sm:$0x1]
    %v30 = vlaneseq
    %v31 = vshrl.u32 %v30, 7
    %v32 = vsub.s32 0, %v31
    %v33 = vrot.slane %v28, %v32
    %vm35 = vcmask 261120
    %v37 = vsel %vm35, %v22, 0
    %v40 = vsel %vm35, %v23, 0
    %42 = vmatprep.subr.mxu0 0.0
    %43 = vmatpush1.msra.mxu0 %v24
    %44 = vmatprep.subr.mxu0 0.0
    %45 = vmatpush1.msra.mxu0 %v25
    %46 = vmatprep.subr.mxu0 0.0
    %47 = vmatpush1.msra.mxu0 %v26
    %48 = vmatprep.subr.mxu0 0.0
    %49 = vmatpush1.msra.mxu0 %v27
    %50 = vmatprep.subr.mxu0 0.0
    %51 = vmatpush1.msra.mxu0 0.0
    %52 = vmatprep.subr.mxu0 0.0
    %53 = vmatpush1.msra.mxu0 0.0
    %54 = vmatprep.subr.mxu0 0.0
    %55 = vmatpush1.msra.mxu0 0.0
    %56 = vmatprep.subr.mxu0 0.0
    %57 = vmatpush1.msra.mxu0 0.0
    %58 = vmatprep.subr.mxu0 0.0
    %59 = vmatpush1.msra.mxu0 0.0
    %60 = vmatprep.subr.mxu0 0.0
    %61 = vmatpush1.msra.mxu0 0.0
    %62 = vmatprep.subr.mxu0 0.0
    %63 = vmatpush1.msra.mxu0 0.0
    %64 = vmatprep.subr.mxu0 0.0
    %65 = vmatpush1.msra.mxu0 0.0
    %66 = vmatprep.subr.mxu0 0.0
    %67 = vmatpush1.msra.mxu0 0.0
    %68 = vmatprep.subr.mxu0 0.0
    %69 = vmatpush1.msra.mxu0 0.0
    %70 = vmatprep.subr.mxu0 0.0
    %71 = vmatpush1.msra.mxu0 0.0
    %72 = vmatprep.subr.mxu0 0.0
    %73 = vmatpush1.msra.mxu0 0.0
    %74 = vmatprep.subr.mxu0 0.0
    %75 = vmatpush1.msra.mxu0 0.0
    %76 = vmatprep.subr.mxu0 0.0
    %77 = vmatpush1.msra.mxu0 0.0
    %78 = vmatprep.subr.mxu0 0.0
    %79 = vmatpush1.msra.mxu0 0.0
    %80 = vmatprep.subr.mxu0 0.0
    %81 = vmatpush1.msra.mxu0 0.0
    %82 = vmatprep.subr.mxu0 0.0
    %83 = vmatpush1.msra.mxu0 0.0
    %84 = vmatprep.subr.mxu0 0.0
    %85 = vmatpush1.msra.mxu0 0.0
    %86 = vmatprep.subr.mxu0 0.0
    %87 = vmatpush1.msra.mxu0 0.0
    %88 = vmatprep.subr.mxu0 0.0
    %89 = vmatpush1.msra.mxu0 0.0
    %90 = vmatprep.subr.mxu0 0.0
    %91 = vmatpush1.msra.mxu0 0.0
    %92 = vmatprep.subr.mxu0 0.0
    %93 = vmatpush1.msra.mxu0 0.0
    %94 = vmatprep.subr.mxu0 0.0
    %95 = vmatpush1.msra.mxu0 0.0
    %96 = vmatprep.subr.mxu0 0.0
    %97 = vmatpush1.msra.mxu0 0.0
    %98 = vmatprep.subr.mxu0 0.0
    %99 = vmatpush1.msra.mxu0 0.0
    %100 = vmatprep.subr.mxu0 0.0
    %101 = vmatpush1.msra.mxu0 0.0
    %102 = vmatprep.subr.mxu0 0.0
    %103 = vmatpush1.msra.mxu0 0.0
    %104 = vmatprep.subr.mxu0 0.0
    %105 = vmatpush1.msra.mxu0 0.0
    %106 = vmatprep.mubr.f32.mxu0 0.0
    %107 = vmatmul.mubr.f32.gmra.mrb[0].mxu0 %v37
    %v108 = vpop.f32.mrb[0].mxu0
    %v109 = vadd.f32 %v33, %v108
    %v110 = vpop.f32.mrb[0].mxu0
    %111 = vmatprep.mubr.f32.mxu0 0.0
    %112 = vmatmul.mubr.f32.gmra.mrb[0].mxu0 %v40
    %v113 = vpop.f32.mrb[0].mxu0
    %v114 = vadd.f32 %v33, %v113
    %v115 = vpop.f32.mrb[0].mxu0
    %116 = vdwg.mxu0
    %v117 = vmax.f32 %v109, 0.0
    %v118 = vmax.f32 %v114, 0.0
    %v119 = vld [vmem:[%s3] sm:$0x1]
    %v121 = vlaneseq
    %v122 = vshrl.u32 %v121, 7
    %v123 = vsub.s32 0, %v122
    %v124 = vrot.slane %v119, %v123
    %v126 = vmul.f32 %v117, %v124
    %v127 = vmul.f32 %v118, %v124
    %vm128 = vcmask 130048
    %v129 = vsel %vm128, %v126, 0.0
    %130 = vadd.xlane.f32.xlu0 %v129
    %v131 = vpop.xlane.xlu0 %130
    %v132 = vsel %vm128, %v127, 0.0
    %133 = vadd.xlane.f32.xlu0 %v132
    %v134 = vpop.xlane.xlu0 %133
    %s135 = sld [smem:[#allocation2]]
    %v136 = vstv %s135
    %v137 = vadd.f32 %v131, %v136
    %v138 = vadd.f32 %v134, %v136
    %v139 = vrot.slane %v137, 4
    %v140 = vmax.f32 %v137, %v139
    %v141 = vrot.slane %v140, 2
    %v142 = vmax.f32 %v140, %v141
    %v143 = vrot.slane %v142, 1
    %v144 = vmax.f32 %v142, %v143
    %v145 = vrot.slane %v138, 4
    %v146 = vmax.f32 %v138, %v145
    %v147 = vrot.slane %v146, 2
    %v148 = vmax.f32 %v146, %v147
    %v149 = vrot.slane %v148, 1
    %v150 = vmax.f32 %v148, %v149
    %v151 = vsub.f32 %v137, %v144
    %v152 = vsub.f32 %v138, %v150
    %v153 = vmul.f32 %v151, 1.442695
    %v154 = vpow.pop %v153
    %v155 = vmul.f32 %v152, 1.442695
    %v156 = vpow.pop %v155
    %v157 = vrot.slane %v154, 4
    %v158 = vadd.f32 %v154, %v157
    %v159 = vrot.slane %v158, 2
    %v160 = vadd.f32 %v158, %v159
    %v161 = vrot.slane %v160, 1
    %v162 = vadd.f32 %v160, %v161
    %v163 = vrot.slane %v156, 4
    %v164 = vadd.f32 %v156, %v163
    %v165 = vrot.slane %v164, 2
    %v166 = vadd.f32 %v164, %v165
    %v167 = vrot.slane %v166, 1
    %v168 = vadd.f32 %v166, %v167
    %v169 = vrcp.pop %v162
    %v170 = vrcp.pop %v168
    %v171 = vmul.f32 %v154, %v169
    %v172 = vmul.f32 %v156, %v170
    %v173 = vmul.f32 %v171, %v22
    %v174 = vmul.f32 %v172, %v23
    %v175 = vsel %vm35, %v173, 0.0
    %v176 = vrot.slane %v175, 4
    %v177 = vadd.f32 %v175, %v176
    %v178 = vrot.slane %v177, 2
    %v179 = vadd.f32 %v177, %v178
    %v180 = vrot.slane %v179, 1
    %v181 = vadd.f32 %v179, %v180
    %v182 = vsel %vm35, %v174, 0.0
    %v183 = vrot.slane %v182, 4
    %v184 = vadd.f32 %v182, %v183
    %v185 = vrot.slane %v184, 2
    %v186 = vadd.f32 %v184, %v185
    %v187 = vrot.slane %v186, 1
    %v188 = vadd.f32 %v186, %v187
    %vm191 = vcmask 1041409
    %v192 = vsel %vm191, %v188, %v181
    %vm194 = vcmask 254976
    %195 = vst.msk [vmem:[#allocation3] sm:$0x3] %vm194, %v192
    // Predicated region
    $region22: #{tpu_custom_call.1} parent=1 // pred_check
      _
    $region23: #{tpu_custom_call.1} parent=1 // pred_check_branch
      %197 = sbr.rel (0) target = $region25
    $region24: #{tpu_custom_call.1} parent=1 // pred_region
      %s199 = ssub.s32 32, 32
      %200 = vsyncadd [#allocation4], %s199
      %s202 = sshll.u32 [#allocation3], 4
      %s203 = int_to_ptr.vmem [resolvable:$true] %s202
      %205 = dma.vmem_to_hbm [thread:$0]  %s203, 32, %s5, [#allocation4]
    $region25: #{tpu_custom_call.1} parent=1 // pred_fallthru
      _
    // Predicated region
    $region26: #{tpu_custom_call.1} parent=1 // pred_check
      _
    $region27: #{tpu_custom_call.1} parent=1 // pred_check_branch
      %207 = sbr.rel (0) target = $region29
    $region28: #{tpu_custom_call.1} parent=1 // pred_region
      %208 = dma.done [#allocation4], 32
    $region29: #{tpu_custom_call.1} parent=1 // pred_fallthru
      _
    %209 = vsyncpa [#allocation4], 1

</llo_original>
